<compile_context>
chip_gen: v7x
topology: tpu7x:2x2x1
jax: 0.10.0
libtpu: 0.0.40
codegen_flags: <defaults>
</compile_context>

<pallas_src>
import math

import jax
import jax.numpy as jnp
from jax.experimental import pallas as pl
from jax.experimental.pallas import tpu as pltpu


LANE = 128
SUBLANE = 8


def _round_up(n, m):
    return ((n + m - 1) // m) * m


def _pick_batch_tile(batch, batch_tile):
    """Batch tile: multiple of 8 sublanes, capped by batch_tile, and capped by
    ceil(batch/2) so the grid has >= 2 steps (v7x two-TensorCore sharding)."""
    if batch <= SUBLANE:
        return batch                                   # single full-array block
    tb = _round_up(min(batch_tile, batch), SUBLANE)
    half = _round_up((batch + 1) // 2, SUBLANE)
    return max(SUBLANE, min(tb, half))


def wnn_kernel(x_ref, w1_ref, b1_ref, w2_ref, b2_ref, w3_ref, b3_ref, o_ref):
    """One batch tile: (Haar-folded) linear -> tanh(linear) -> linear."""
    # x arrives in f32 straight from HBM; cast to the MXU compute dtype here.
    x = x_ref[...].astype(w1_ref.dtype)                       # (TB, D)

    # Layer 1 (Haar transform already folded into w1 by the wrapper).
    h1 = jnp.dot(x, w1_ref[...],
                 preferred_element_type=jnp.float32) + b1_ref[...]

    # Layer 2: matmul operands in compute dtype, bias-add + tanh in f32 (EUP).
    h2 = jnp.tanh(
        jnp.dot(h1.astype(w2_ref.dtype), w2_ref[...],
                preferred_element_type=jnp.float32) + b2_ref[...]
    )

    # Layer 3: matmul against the lane-padded w3, then store only the true
    # output_dim columns (masked narrow store is trivial; HBM bandwidth isn't).
    o = jnp.dot(h2.astype(w3_ref.dtype), w3_ref[...],
                preferred_element_type=jnp.float32) + b3_ref[...]
    o_ref[...] = o[:, : o_ref.shape[-1]].astype(o_ref.dtype)


def make_params(input_dim, hidden_dim, output_dim, key):
    """Deterministic parameter init (stand-in for nn.Linear defaults)."""
    assert input_dim % 2 == 0
    half = input_dim // 2
    k1, k2, k3, k4, k5, k6 = jax.random.split(key, 6)

    def linear_init(kw, kb, fan_in, fan_out):
        bound = 1.0 / math.sqrt(fan_in)
        w = jax.random.uniform(kw, (fan_in, fan_out), jnp.float32, -bound, bound)
        b = jax.random.uniform(kb, (1, fan_out), jnp.float32, -bound, bound)
        return w, b

    w1, b1 = linear_init(k1, k2, half, hidden_dim)        # wavelet_conv.linear
    w2, b2 = linear_init(k3, k4, hidden_dim, hidden_dim)  # hidden
    w3, b3 = linear_init(k5, k6, hidden_dim, output_dim)  # out
    return w1, b1, w2, b2, w3, b3


def prepare_params(params, compute_dtype=jnp.bfloat16, lane_multiple=LANE):
    """Fold Haar into w1, lane-pad the matmul operands, cast to compute dtype.

    Pass lane_multiple=256 on v6e/v7x when hidden_dim >= 256 to keep the
    2x256x256 MXU full-width (keep 128 on v5e).  Only the *operands* are
    padded; the stored output is kept at the true output_dim by the kernel.
    """
    # TODO(synk): only the 'db1' (Haar) wavelet is implemented; other pywt
    # wavelet families would need their analysis filters folded here instead.
    w1, b1, w2, b2, w3, b3 = params
    half, hidden = w1.shape
    out_dim = w3.shape[1]
    input_dim = 2 * half
    inv_sqrt2 = 1.0 / math.sqrt(2.0)

    # Fold the level-1 Haar approximation (cA[k] = (x[2k] + x[2k+1]) / sqrt(2))
    # into the first linear layer:  x @ w1_eff  ==  cA @ w1.
    w1_eff = jnp.repeat(w1, 2, axis=0) * inv_sqrt2        # (D, H)

    hp = _round_up(hidden, lane_multiple)
    op = _round_up(out_dim, lane_multiple)

    def pad2(a, rows, cols):
        out = jnp.zeros((rows, cols), jnp.float32)
        return out.at[: a.shape[0], : a.shape[1]].set(a)

    w1p = pad2(w1_eff, input_dim, hp).astype(compute_dtype)
    w2p = pad2(w2, hp, hp).astype(compute_dtype)
    w3p = pad2(w3, hp, op).astype(compute_dtype)
    b1p = pad2(b1, 1, hp)   # biases stay f32
    b2p = pad2(b2, 1, hp)
    b3p = pad2(b3, 1, op)
    return (w1p, b1p, w2p, b2p, w3p, b3p), out_dim


def wnn_forward(x, prepared, output_dim, *, batch_tile=1024,
                out_dtype=jnp.float32):
    """x: (batch, input_dim) f32 -> (batch, output_dim) out_dtype."""
    w1p, b1p, w2p, b2p, w3p, b3p = prepared
    batch, input_dim = x.shape
    hp = w1p.shape[1]
    op = w3p.shape[1]

    tb = _pick_batch_tile(batch, batch_tile)
    grid = (pl.cdiv(batch, tb),)

    # Grid-invariant operands: same block every step -> stay VMEM-resident.
    # Single-buffer them once they are large enough to matter so big hidden
    # dims don't double their footprint (v7x has only 64 MiB VMEM).
    resident_bytes = sum(a.size * a.dtype.itemsize for a in prepared)
    single_buffer_weights = resident_bytes > (8 << 20)

    def resident(shape):
        if single_buffer_weights:
            return pl.BlockSpec(shape, lambda i: (0, 0),
                                pipeline_mode=pl.Buffered(1))
        return pl.BlockSpec(shape, lambda i: (0, 0))

    out_itemsize = jnp.dtype(out_dtype).itemsize
    stream_bytes = tb * (input_dim * x.dtype.itemsize
                         + output_dim * out_itemsize)
    interm_bytes = 2 * tb * hp * 4                      # h1/h2 f32 temporaries
    est_vmem = ((1 if single_buffer_weights else 2) * resident_bytes
                + 2 * stream_bytes + interm_bytes)
    # Explicit scoped-VMEM limit: v5e's default is only 16 MiB; cap at 64 MiB
    # so the request is valid on v7x as well.
    vmem_limit = int(min(64 << 20, max(32 << 20, 3 * est_vmem // 2)))

    flops = 2 * batch * (input_dim * hp + hp * hp + hp * op)
    bytes_accessed = (x.size * x.dtype.itemsize + resident_bytes
                      + batch * output_dim * out_itemsize)

    return pl.pallas_call(
        wnn_kernel,
        out_shape=jax.ShapeDtypeStruct((batch, output_dim), out_dtype),
        grid=grid,
        in_specs=[
            pl.BlockSpec((tb, input_dim), lambda i: (i, 0)),
            resident(w1p.shape), resident(b1p.shape),
            resident(w2p.shape), resident(b2p.shape),
            resident(w3p.shape), resident(b3p.shape),
        ],
        out_specs=pl.BlockSpec((tb, output_dim), lambda i: (i, 0)),
        compiler_params=pltpu.CompilerParams(
            dimension_semantics=("parallel",),
            vmem_limit_bytes=vmem_limit),
        cost_estimate=pl.CostEstimate(
            flops=flops,
            transcendentals=batch * hp,
            bytes_accessed=bytes_accessed),
    )(x, w1p, b1p, w2p, b2p, w3p, b3p)


def wnn_reference(x, params):
    """Pure-JAX f32 reference mirroring the PyTorch forward."""
    w1, b1, w2, b2, w3, b3 = params
    b, d = x.shape
    ca = x.reshape(b, d // 2, 2).sum(-1) / math.sqrt(2.0)
    h1 = ca @ w1 + b1
    h2 = jnp.tanh(h1 @ w2 + b2)
    return h2 @ w3 + b3


def wnn_matched_reference(x, prepared, output_dim, compute_dtype=jnp.bfloat16):
    """Reference using the same folded/padded/bf16-cast operands as the kernel."""
    w1p, b1p, w2p, b2p, w3p, b3p = prepared
    xc = x.astype(compute_dtype)
    h1 = jnp.dot(xc, w1p, preferred_element_type=jnp.float32) + b1p
    h2 = jnp.tanh(jnp.dot(h1.astype(compute_dtype), w2p,
                          preferred_element_type=jnp.float32) + b2p)
    o = jnp.dot(h2.astype(compute_dtype), w3p,
                preferred_element_type=jnp.float32) + b3p
    return o[:, :output_dim]


if __name__ == "__main__":
    batch = 2
    input_dim = 16
    hidden_dim = 32
    output_dim = 8

    key = jax.random.PRNGKey(0)
    kx, kp = jax.random.split(key)

    x = jax.random.normal(kx, (batch, input_dim), jnp.float32)
    params = make_params(input_dim, hidden_dim, output_dim, kp)
    prepared, out_dim = prepare_params(params, compute_dtype=jnp.bfloat16)

    out = wnn_forward(x, prepared, out_dim)
    out = jax.block_until_ready(out)
    assert out.shape == (batch, output_dim)
    assert out.dtype == jnp.float32

    # Tight check against a reference that applies the identical bf16 casts.
    ref_matched = wnn_matched_reference(x, prepared, out_dim)
    err_m = jnp.max(jnp.abs(out - ref_matched))
    assert jnp.allclose(out, ref_matched, atol=2e-3, rtol=2e-3), (
        f"mismatch vs bf16-matched reference: max abs err {err_m}")

    # Looser check against the full-f32 PyTorch-equivalent forward
    # (differences are purely from the bf16 operand casts).
    ref_f32 = wnn_reference(x, params)
    err_f = jnp.max(jnp.abs(out - ref_f32))
    assert jnp.allclose(out, ref_f32, atol=1e-1, rtol=1e-1), (
        f"mismatch vs f32 reference: max abs err {err_f}")

    print("KERNEL_OK")
</pallas_src>

<mosaic_0001>
module attributes {stable_mosaic.version = 11 : i64} {
  func.func @wnn_kernel(%arg0: i32, %arg1: memref<2x16xf32, #tpu.memory_space<vmem>>, %arg2: memref<16x128xbf16, #tpu.memory_space<vmem>>, %arg3: memref<1x128xf32, #tpu.memory_space<vmem>>, %arg4: memref<128x128xbf16, #tpu.memory_space<vmem>>, %arg5: memref<1x128xf32, #tpu.memory_space<vmem>>, %arg6: memref<128x128xbf16, #tpu.memory_space<vmem>>, %arg7: memref<1x128xf32, #tpu.memory_space<vmem>>, %arg8: memref<2x8xf32, #tpu.memory_space<vmem>>) attributes {dimension_semantics = [#tpu.dimension_semantics<parallel>], iteration_bounds = array<i64: 1>, scalar_prefetch = 0 : i64, scratch_operands = 0 : i64, tpu.core_type = #tpu.core_type<tc>, window_params = [{transform_indices = @transform_0, window_bounds = array<i64: 2, 16>}, {pipeline_mode = #tpu.pipeline_mode<synchronous>, transform_indices = @transform_1, window_bounds = array<i64: 16, 128>}, {pipeline_mode = #tpu.pipeline_mode<synchronous>, transform_indices = @transform_2, window_bounds = array<i64: 1, 128>}, {pipeline_mode = #tpu.pipeline_mode<synchronous>, transform_indices = @transform_3, window_bounds = array<i64: 128, 128>}, {pipeline_mode = #tpu.pipeline_mode<synchronous>, transform_indices = @transform_4, window_bounds = array<i64: 1, 128>}, {pipeline_mode = #tpu.pipeline_mode<synchronous>, transform_indices = @transform_5, window_bounds = array<i64: 128, 128>}, {pipeline_mode = #tpu.pipeline_mode<synchronous>, transform_indices = @transform_6, window_bounds = array<i64: 1, 128>}, {transform_indices = @transform_7, window_bounds = array<i64: 2, 8>}]} {
    %c0 = arith.constant 0 : index
    %c0_0 = arith.constant 0 : index
    %0 = vector.load %arg1[%c0, %c0_0] : memref<2x16xf32, #tpu.memory_space<vmem>>, vector<2x16xf32>
    %1 = arith.truncf %0 : vector<2x16xf32> to vector<2x16xbf16>
    %c0_1 = arith.constant 0 : index
    %c0_2 = arith.constant 0 : index
    %2 = vector.load %arg2[%c0_1, %c0_2] : memref<16x128xbf16, #tpu.memory_space<vmem>>, vector<16x128xbf16>
    %cst = arith.constant dense<0.000000e+00> : vector<2x128xf32>
    %3 = tpu.matmul %1, %2, %cst {dimension_numbers = #tpu.dot_dimension_numbers<[1], [0], [0], [1], [0, 0, 1, 1], [], []>} : vector<2x16xbf16>, vector<16x128xbf16>, vector<2x128xf32> -> vector<2x128xf32>
    %c0_3 = arith.constant 0 : index
    %c0_4 = arith.constant 0 : index
    %4 = vector.load %arg3[%c0_3, %c0_4] : memref<1x128xf32, #tpu.memory_space<vmem>>, vector<1x128xf32>
    %5 = vector.broadcast %4 : vector<1x128xf32> to vector<2x128xf32>
    %6 = arith.addf %3, %5 : vector<2x128xf32>
    %7 = arith.truncf %6 : vector<2x128xf32> to vector<2x128xbf16>
    %c0_5 = arith.constant 0 : index
    %c0_6 = arith.constant 0 : index
    %8 = vector.load %arg4[%c0_5, %c0_6] : memref<128x128xbf16, #tpu.memory_space<vmem>>, vector<128x128xbf16>
    %cst_7 = arith.constant dense<0.000000e+00> : vector<2x128xf32>
    %9 = tpu.matmul %7, %8, %cst_7 {dimension_numbers = #tpu.dot_dimension_numbers<[1], [0], [0], [1], [0, 0, 1, 1], [], []>} : vector<2x128xbf16>, vector<128x128xbf16>, vector<2x128xf32> -> vector<2x128xf32>
    %c0_8 = arith.constant 0 : index
    %c0_9 = arith.constant 0 : index
    %10 = vector.load %arg5[%c0_8, %c0_9] : memref<1x128xf32, #tpu.memory_space<vmem>>, vector<1x128xf32>
    %11 = vector.broadcast %10 : vector<1x128xf32> to vector<2x128xf32>
    %12 = arith.addf %9, %11 : vector<2x128xf32>
    %13 = math.tanh %12 : vector<2x128xf32>
    %14 = arith.truncf %13 : vector<2x128xf32> to vector<2x128xbf16>
    %c0_10 = arith.constant 0 : index
    %c0_11 = arith.constant 0 : index
    %15 = vector.load %arg6[%c0_10, %c0_11] : memref<128x128xbf16, #tpu.memory_space<vmem>>, vector<128x128xbf16>
    %cst_12 = arith.constant dense<0.000000e+00> : vector<2x128xf32>
    %16 = tpu.matmul %14, %15, %cst_12 {dimension_numbers = #tpu.dot_dimension_numbers<[1], [0], [0], [1], [0, 0, 1, 1], [], []>} : vector<2x128xbf16>, vector<128x128xbf16>, vector<2x128xf32> -> vector<2x128xf32>
    %c0_13 = arith.constant 0 : index
    %c0_14 = arith.constant 0 : index
    %17 = vector.load %arg7[%c0_13, %c0_14] : memref<1x128xf32, #tpu.memory_space<vmem>>, vector<1x128xf32>
    %18 = vector.broadcast %17 : vector<1x128xf32> to vector<2x128xf32>
    %19 = arith.addf %16, %18 : vector<2x128xf32>
    %20 = vector.extract_strided_slice %19 {offsets = [0, 0], sizes = [2, 8], strides = [1, 1]} : vector<2x128xf32> to vector<2x8xf32>
    %c0_15 = arith.constant 0 : index
    %c0_16 = arith.constant 0 : index
    %21 = vector.load %arg8[%c0_15, %c0_16] : memref<2x8xf32, #tpu.memory_space<vmem>>, vector<2x8xf32>
    tpu.vector_store %arg8[%c0_15, %c0_16], %20 {strides = array<i32>} : memref<2x8xf32, #tpu.memory_space<vmem>>, vector<2x8xf32>,
    return
  }
  func.func @transform_0(%arg0: i32) -> (i32, i32) {
    %c0_i32 = arith.constant 0 : i32
    %c0_i32_0 = arith.constant 0 : i32
    return %arg0, %c0_i32 : i32, i32
  }
  func.func @transform_1(%arg0: i32) -> (i32, i32) {
    %c0_i32 = arith.constant 0 : i32
    %c0_i32_0 = arith.constant 0 : i32
    %c0_i32_1 = arith.constant 0 : i32
    return %c0_i32, %c0_i32_0 : i32, i32
  }
  func.func @transform_2(%arg0: i32) -> (i32, i32) {
    %c0_i32 = arith.constant 0 : i32
    %c0_i32_0 = arith.constant 0 : i32
    %c0_i32_1 = arith.constant 0 : i32
    return %c0_i32, %c0_i32_0 : i32, i32
  }
  func.func @transform_3(%arg0: i32) -> (i32, i32) {
    %c0_i32 = arith.constant 0 : i32
    %c0_i32_0 = arith.constant 0 : i32
    %c0_i32_1 = arith.constant 0 : i32
    return %c0_i32, %c0_i32_0 : i32, i32
  }
  func.func @transform_4(%arg0: i32) -> (i32, i32) {
    %c0_i32 = arith.constant 0 : i32
    %c0_i32_0 = arith.constant 0 : i32
    %c0_i32_1 = arith.constant 0 : i32
    return %c0_i32, %c0_i32_0 : i32, i32
  }
  func.func @transform_5(%arg0: i32) -> (i32, i32) {
    %c0_i32 = arith.constant 0 : i32
    %c0_i32_0 = arith.constant 0 : i32
    %c0_i32_1 = arith.constant 0 : i32
    return %c0_i32, %c0_i32_0 : i32, i32
  }
  func.func @transform_6(%arg0: i32) -> (i32, i32) {
    %c0_i32 = arith.constant 0 : i32
    %c0_i32_0 = arith.constant 0 : i32
    %c0_i32_1 = arith.constant 0 : i32
    return %c0_i32, %c0_i32_0 : i32, i32
  }
  func.func @transform_7(%arg0: i32) -> (i32, i32) {
    %c0_i32 = arith.constant 0 : i32
    %c0_i32_0 = arith.constant 0 : i32
    return %arg0, %c0_i32 : i32, i32
  }
}

</mosaic_0001>

<llo_original>
// kernel: tpu_custom_call.1
$region0: #{tpu_custom_call.1}
  #allocation0 [shape = 'u32[]', space=smem, size = 0x4, offset = 0x4, fixed_abs, tag = 'smem constant byte address 0x4 - core index']
  #allocation1 [shape = 'u32[144,128]{1,0:T(1,128)}', space=vmem, size = 0x12000, scoped, tag = 'internal scratch']
  %s0 = inlined_call_operand.hbm [shape: f32[2,16], index: 0, kind: input, shape index: {}]
  %s1 = inlined_call_operand.hbm [shape: bf16[16,128], index: 1, kind: input, shape index: {}]
  %s2 = inlined_call_operand.vmem [shape: f32[1,128], index: 2, kind: input, shape index: {}]
  %s3 = inlined_call_operand.hbm [shape: bf16[128,128], index: 3, kind: input, shape index: {}]
  %s4 = inlined_call_operand.vmem [shape: f32[1,128], index: 4, kind: input, shape index: {}]
  %s5 = inlined_call_operand.hbm [shape: bf16[128,128], index: 5, kind: input, shape index: {}]
  %s6 = inlined_call_operand.vmem [shape: f32[1,128], index: 6, kind: input, shape index: {}]
  %s7 = inlined_call_operand.hbm [shape: f32[2,8], index: 7, kind: output, shape index: {}]
  %s8 = sld [smem:[#allocation0]]
  $region54: #{tpu_custom_call.1} parent=0
    _
  %s10 = ssub.s32 1, %s8
  %s11 = scalar_select 0, %s10, %s8
  $region1: #{tpu_custom_call.1} parent=0
    #allocation2 [shape = 'u8[1024]{0}', space=vmem, size = 0x400, scoped, tag = 'input window, operand 0, single buffered']
    #allocation3 [shape = 's32[1]{0}', space=sflag, size = 0x4, scoped, tag = 'scoped memory for tpu_custom_call.1']
    #allocation4 [shape = 's32[1]{0}', space=sflag, size = 0x4, scoped, tag = 'scoped memory for tpu_custom_call.1']
    #allocation5 [shape = 'u8[4096]{0}', space=vmem, size = 0x1000, scoped, tag = 'input window, operand 1, single buffered']
    #allocation6 [shape = 's32[1]{0}', space=sflag, size = 0x4, scoped, tag = 'scoped memory for tpu_custom_call.1']
    #allocation7 [shape = 'u8[32768]{0}', space=vmem, size = 0x8000, scoped, tag = 'input window, operand 3, single buffered']
    #allocation8 [shape = 'u8[32768]{0}', space=vmem, size = 0x8000, scoped, tag = 'input window, operand 5, single buffered']
    #allocation9 [shape = 's32[1]{0}', space=sflag, size = 0x4, scoped, tag = 'scoped memory for tpu_custom_call.1']
    #allocation10 [shape = 'u8[1024]{0}', space=vmem, size = 0x400, scoped, tag = 'output window, operand 0, single buffered']
    %12 = vsyncpa [#allocation3], 0
    %13 = vsyncpa [#allocation6], 0
    %14 = vsyncpa [#allocation9], 0
    %15 = vsyncpa [#allocation4], 0
    // Predicated region
    $region2: #{tpu_custom_call.1} parent=1 // pred_check
      _
    $region3: #{tpu_custom_call.1} parent=1 // pred_check_branch
      %17 = sbr.rel (0) target = $region5
    $region4: #{tpu_custom_call.1} parent=1 // pred_region
      %s19 = ssub.s32 32, 32
      %20 = vsyncadd [#allocation3], %s19
      %s22 = sshll.u32 [#allocation2], 4
      %s23 = int_to_ptr.vmem [resolvable:$true] %s22
      %25 = dma.hbm_to_vmem [thread:$0]  %s0, 32, %s23, [#allocation3]
    $region5: #{tpu_custom_call.1} parent=1 // pred_fallthru
      _
    // Predicated region
    $region6: #{tpu_custom_call.1} parent=1 // pred_check
      _
    $region7: #{tpu_custom_call.1} parent=1 // pred_check_branch
      %27 = sbr.rel (0) target = $region9
    $region8: #{tpu_custom_call.1} parent=1 // pred_region
      %s29 = ssub.s32 128, 128
      %30 = vsyncadd [#allocation6], %s29
      %s31 = sshll.u32 [#allocation5], 4
      %s32 = int_to_ptr.vmem [resolvable:$true] %s31
      %37 = dma.hbm_to_vmem [thread:$0]  %s1, 128, %s32, [#allocation6], 64, 64, 4
    $region9: #{tpu_custom_call.1} parent=1 // pred_fallthru
      _
    // Predicated region
    $region10: #{tpu_custom_call.1} parent=1 // pred_check
      _
    $region11: #{tpu_custom_call.1} parent=1 // pred_check_branch
      %39 = sbr.rel (0) target = $region13
    $region12: #{tpu_custom_call.1} parent=1 // pred_region
      _
    $region13: #{tpu_custom_call.1} parent=1 // pred_fallthru
      _
    // Predicated region
    $region14: #{tpu_custom_call.1} parent=1 // pred_check
      _
    $region15: #{tpu_custom_call.1} parent=1 // pred_check_branch
      %41 = sbr.rel (0) target = $region17
    $region16: #{tpu_custom_call.1} parent=1 // pred_region
      %s43 = ssub.s32 1024, 1024
      %44 = vsyncadd [#allocation6], %s43
      %s45 = sshll.u32 [#allocation7], 4
      %s46 = int_to_ptr.vmem [resolvable:$true] %s45
      %51 = dma.hbm_to_vmem [thread:$0]  %s3, 1024, %s46, [#allocation6], 64, 64, 4
    $region17: #{tpu_custom_call.1} parent=1 // pred_fallthru
      _
    // Predicated region
    $region18: #{tpu_custom_call.1} parent=1 // pred_check
      _
    $region19: #{tpu_custom_call.1} parent=1 // pred_check_branch
      %53 = sbr.rel (0) target = $region21
    $region20: #{tpu_custom_call.1} parent=1 // pred_region
      _
    $region21: #{tpu_custom_call.1} parent=1 // pred_fallthru
      _
    // Predicated region
    $region22: #{tpu_custom_call.1} parent=1 // pred_check
      _
    $region23: #{tpu_custom_call.1} parent=1 // pred_check_branch
      %55 = sbr.rel (0) target = $region25
    $region24: #{tpu_custom_call.1} parent=1 // pred_region
      %s57 = ssub.s32 1024, 1024
      %58 = vsyncadd [#allocation9], %s57
      %s59 = sshll.u32 [#allocation8], 4
      %s60 = int_to_ptr.vmem [resolvable:$true] %s59
      %65 = dma.hbm_to_vmem [thread:$0]  %s5, 1024, %s60, [#allocation9], 64, 64, 4
    $region25: #{tpu_custom_call.1} parent=1 // pred_fallthru
      _
    // Predicated region
    $region26: #{tpu_custom_call.1} parent=1 // pred_check
      _
    $region27: #{tpu_custom_call.1} parent=1 // pred_check_branch
      %67 = sbr.rel (0) target = $region29
    $region28: #{tpu_custom_call.1} parent=1 // pred_region
      _
    $region29: #{tpu_custom_call.1} parent=1 // pred_fallthru
      _
    // Predicated region
    $region30: #{tpu_custom_call.1} parent=1 // pred_check
      _
    $region31: #{tpu_custom_call.1} parent=1 // pred_check_branch
      %69 = sbr.rel (0) target = $region33
    $region32: #{tpu_custom_call.1} parent=1 // pred_region
      %70 = dma.done [#allocation3], 32
    $region33: #{tpu_custom_call.1} parent=1 // pred_fallthru
      _
    // Predicated region
    $region34: #{tpu_custom_call.1} parent=1 // pred_check
      _
    $region35: #{tpu_custom_call.1} parent=1 // pred_check_branch
      %72 = sbr.rel (0) target = $region37
    $region36: #{tpu_custom_call.1} parent=1 // pred_region
      %73 = dma.done [#allocation6], 128
    $region37: #{tpu_custom_call.1} parent=1 // pred_fallthru
      _
    // Predicated region
    $region38: #{tpu_custom_call.1} parent=1 // pred_check
      _
    $region39: #{tpu_custom_call.1} parent=1 // pred_check_branch
      %75 = sbr.rel (0) target = $region41
    $region40: #{tpu_custom_call.1} parent=1 // pred_region
      %76 = dma.done [#allocation6], 1024
    $region41: #{tpu_custom_call.1} parent=1 // pred_fallthru
      _
    // Predicated region
    $region42: #{tpu_custom_call.1} parent=1 // pred_check
      _
    $region43: #{tpu_custom_call.1} parent=1 // pred_check_branch
      %78 = sbr.rel (0) target = $region45
    $region44: #{tpu_custom_call.1} parent=1 // pred_region
      %79 = dma.done [#allocation9], 1024
    $region45: #{tpu_custom_call.1} parent=1 // pred_fallthru
      _
    %v81 = vld [vmem:[#allocation2] sm:$0x3]
    %v82 = vpack.c.bf16 %v81, %v81
    %v83 = vld [vmem:[#allocation5] sm:$0xf]
    %v84 = vld [vmem:[#allocation5 + $0x4] sm:$0xf]
    %v85 = vld [vmem:[%s2] sm:$0x1]
    %v87 = vlaneseq
    %v88 = vshrl.u32 %v87, 7
    %v89 = vsub.s32 0, %v88
    %v90 = vrot.slane %v85, %v89
    %v94 = vunpack.c.l.b16 %v83
    %v95 = vunpack.c.l.b16 %v84
    %v96 = vpack.c.b16 %v95, %v94
    %vm98 = vcmask 130048
    %v100 = vsel %vm98, %v82, 0
    %102 = vmatprep.subr.bf16.mxu0 0
    %103 = vmatpush1.bf16.msra.mxu0 %v96
    %104 = vmatprep.subr.bf16.mxu0 0
    %105 = vmatpush1.bf16.msra.mxu0 0
    %106 = vmatprep.subr.bf16.mxu0 0
    %107 = vmatpush1.bf16.msra.mxu0 0
    %108 = vmatprep.subr.bf16.mxu0 0
    %109 = vmatpush1.bf16.msra.mxu0 0
    %110 = vmatprep.subr.bf16.mxu0 0
    %111 = vmatpush1.bf16.msra.mxu0 0
    %112 = vmatprep.subr.bf16.mxu0 0
    %113 = vmatpush1.bf16.msra.mxu0 0
    %114 = vmatprep.subr.bf16.mxu0 0
    %115 = vmatpush1.bf16.msra.mxu0 0
    %116 = vmatprep.subr.bf16.mxu0 0
    %117 = vmatpush1.bf16.msra.mxu0 0
    %118 = vmatprep.subr.bf16.mxu0 0
    %119 = vmatpush1.bf16.msra.mxu0 0
    %120 = vmatprep.subr.bf16.mxu0 0
    %121 = vmatpush1.bf16.msra.mxu0 0
    %122 = vmatprep.subr.bf16.mxu0 0
    %123 = vmatpush1.bf16.msra.mxu0 0
    %124 = vmatprep.subr.bf16.mxu0 0
    %125 = vmatpush1.bf16.msra.mxu0 0
    %126 = vmatprep.subr.bf16.mxu0 0
    %127 = vmatpush1.bf16.msra.mxu0 0
    %128 = vmatprep.subr.bf16.mxu0 0
    %129 = vmatpush1.bf16.msra.mxu0 0
    %130 = vmatprep.subr.bf16.mxu0 0
    %131 = vmatpush1.bf16.msra.mxu0 0
    %132 = vmatprep.subr.bf16.mxu0 0
    %133 = vmatpush1.bf16.msra.mxu0 0
    %134 = vmatprep.mubr.bf16.mxu0 0
    %135 = vmatmul.mubr.bf16.gmra.mrb[0].mxu0 %v100
    %v136 = vpop.f32.mrb[0].mxu0
    %v137 = vadd.f32 %v90, %v136
    %v138 = vpop.f32.mrb[0].mxu0
    %v139 = vpop.f32.mrb[0].mxu0
    %v140 = vpop.f32.mrb[0].mxu0
    %141 = vdwg.mxu0
    %v142 = vpack.c.bf16 %v137, %v137
    %v143 = vld [vmem:[#allocation7] sm:$0xf]
    %v144 = vld [vmem:[#allocation7 + $0x4] sm:$0xf]
    %v145 = vld [vmem:[#allocation7 + $0x8] sm:$0xf]
    %v146 = vld [vmem:[#allocation7 + $0xc] sm:$0xf]
    %v147 = vld [vmem:[#allocation7 + $0x10] sm:$0xf]
    %v148 = vld [vmem:[#allocation7 + $0x14] sm:$0xf]
    %v149 = vld [vmem:[#allocation7 + $0x18] sm:$0xf]
    %v150 = vld [vmem:[#allocation7 + $0x1c] sm:$0xf]
    %v151 = vld [vmem:[#allocation7 + $0x20] sm:$0xf]
    %v152 = vld [vmem:[#allocation7 + $0x24] sm:$0xf]
    %v153 = vld [vmem:[#allocation7 + $0x28] sm:$0xf]
    %v154 = vld [vmem:[#allocation7 + $0x2c] sm:$0xf]
    %v155 = vld [vmem:[#allocation7 + $0x30] sm:$0xf]
    %v156 = vld [vmem:[#allocation7 + $0x34] sm:$0xf]
    %v157 = vld [vmem:[#allocation7 + $0x38] sm:$0xf]
    %v158 = vld [vmem:[#allocation7 + $0x3c] sm:$0xf]
    %v159 = vld [vmem:[%s4] sm:$0x1]
    %v161 = vlaneseq
    %v162 = vshrl.u32 %v161, 7
    %v163 = vsub.s32 0, %v162
    %v164 = vrot.slane %v159, %v163
    %v182 = vunpack.c.l.b16 %v143
    %v183 = vunpack.c.l.b16 %v144
    %v184 = vunpack.c.l.b16 %v145
    %v185 = vunpack.c.l.b16 %v146
    %v186 = vunpack.c.l.b16 %v147
    %v187 = vunpack.c.l.b16 %v148
    %v188 = vunpack.c.l.b16 %v149
    %v189 = vunpack.c.l.b16 %v150
    %v190 = vunpack.c.l.b16 %v151
    %v191 = vunpack.c.l.b16 %v152
    %v192 = vunpack.c.l.b16 %v153
    %v193 = vunpack.c.l.b16 %v154
    %v194 = vunpack.c.l.b16 %v155
    %v195 = vunpack.c.l.b16 %v156
    %v196 = vunpack.c.l.b16 %v157
    %v197 = vunpack.c.l.b16 %v158
    %v198 = vpack.c.b16 %v183, %v182
    %v199 = vpack.c.b16 %v185, %v184
    %v200 = vpack.c.b16 %v187, %v186
    %v201 = vpack.c.b16 %v189, %v188
    %v202 = vpack.c.b16 %v191, %v190
    %v203 = vpack.c.b16 %v193, %v192
    %v204 = vpack.c.b16 %v195, %v194
    %v205 = vpack.c.b16 %v197, %v196
    %214 = vmatprep.subr.bf16.mxu0 0
    %215 = vmatpush1.bf16.msra.mxu0 %v198
    %216 = vmatprep.subr.bf16.mxu0 0
    %217 = vmatpush1.bf16.msra.mxu0 %v199
    %218 = vmatprep.subr.bf16.mxu0 0
    %219 = vmatpush1.bf16.msra.mxu0 %v200
    %220 = vmatprep.subr.bf16.mxu0 0
    %221 = vmatpush1.bf16.msra.mxu0 %v201
    %222 = vmatprep.subr.bf16.mxu0 0
    %223 = vmatpush1.bf16.msra.mxu0 %v202
    %224 = vmatprep.subr.bf16.mxu0 0
    %225 = vmatpush1.bf16.msra.mxu0 %v203
    %226 = vmatprep.subr.bf16.mxu0 0
    %227 = vmatpush1.bf16.msra.mxu0 %v204
    %228 = vmatprep.subr.bf16.mxu0 0
    %229 = vmatpush1.bf16.msra.mxu0 %v205
    %230 = vmatprep.subr.bf16.mxu0 0
    %231 = vmatpush1.bf16.msra.mxu0 0
    %232 = vmatprep.subr.bf16.mxu0 0
    %233 = vmatpush1.bf16.msra.mxu0 0
    %234 = vmatprep.subr.bf16.mxu0 0
    %235 = vmatpush1.bf16.msra.mxu0 0
    %236 = vmatprep.subr.bf16.mxu0 0
    %237 = vmatpush1.bf16.msra.mxu0 0
    %238 = vmatprep.subr.bf16.mxu0 0
    %239 = vmatpush1.bf16.msra.mxu0 0
    %240 = vmatprep.subr.bf16.mxu0 0
    %241 = vmatpush1.bf16.msra.mxu0 0
    %242 = vmatprep.subr.bf16.mxu0 0
    %243 = vmatpush1.bf16.msra.mxu0 0
    %244 = vmatprep.subr.bf16.mxu0 0
    %245 = vmatpush1.bf16.msra.mxu0 0
    %246 = vmatprep.mubr.bf16.mxu0 0
    %247 = vmatmul.mubr.bf16.gmra.mrb[0].mxu0 %v142
    %v248 = vpop.f32.mrb[0].mxu0
    %v249 = vadd.f32 %v164, %v248
    %v250 = vpop.f32.mrb[0].mxu0
    %v251 = vpop.f32.mrb[0].mxu0
    %v252 = vpop.f32.mrb[0].mxu0
    %253 = vdwg.mxu0
    %v254 = vtanh.pop %v249
    %v255 = vpack.c.bf16 %v254, %v254
    %v256 = vld [vmem:[#allocation8] sm:$0xf]
    %v257 = vld [vmem:[#allocation8 + $0x4] sm:$0xf]
    %v258 = vld [vmem:[#allocation8 + $0x8] sm:$0xf]
    %v259 = vld [vmem:[#allocation8 + $0xc] sm:$0xf]
    %v260 = vld [vmem:[#allocation8 + $0x10] sm:$0xf]
    %v261 = vld [vmem:[#allocation8 + $0x14] sm:$0xf]
    %v262 = vld [vmem:[#allocation8 + $0x18] sm:$0xf]
    %v263 = vld [vmem:[#allocation8 + $0x1c] sm:$0xf]
    %v264 = vld [vmem:[#allocation8 + $0x20] sm:$0xf]
    %v265 = vld [vmem:[#allocation8 + $0x24] sm:$0xf]
    %v266 = vld [vmem:[#allocation8 + $0x28] sm:$0xf]
    %v267 = vld [vmem:[#allocation8 + $0x2c] sm:$0xf]
    %v268 = vld [vmem:[#allocation8 + $0x30] sm:$0xf]
    %v269 = vld [vmem:[#allocation8 + $0x34] sm:$0xf]
    %v270 = vld [vmem:[#allocation8 + $0x38] sm:$0xf]
    %v271 = vld [vmem:[#allocation8 + $0x3c] sm:$0xf]
    %v272 = vld [vmem:[%s6] sm:$0x1]
    %v274 = vlaneseq
    %v275 = vshrl.u32 %v274, 7
    %v276 = vsub.s32 0, %v275
    %v277 = vrot.slane %v272, %v276
    %v295 = vunpack.c.l.b16 %v256
    %v296 = vunpack.c.l.b16 %v257
    %v297 = vunpack.c.l.b16 %v258
    %v298 = vunpack.c.l.b16 %v259
    %v299 = vunpack.c.l.b16 %v260
    %v300 = vunpack.c.l.b16 %v261
    %v301 = vunpack.c.l.b16 %v262
    %v302 = vunpack.c.l.b16 %v263
    %v303 = vunpack.c.l.b16 %v264
    %v304 = vunpack.c.l.b16 %v265
    %v305 = vunpack.c.l.b16 %v266
    %v306 = vunpack.c.l.b16 %v267
    %v307 = vunpack.c.l.b16 %v268
    %v308 = vunpack.c.l.b16 %v269
    %v309 = vunpack.c.l.b16 %v270
    %v310 = vunpack.c.l.b16 %v271
    %v311 = vpack.c.b16 %v296, %v295
    %v312 = vpack.c.b16 %v298, %v297
    %v313 = vpack.c.b16 %v300, %v299
    %v314 = vpack.c.b16 %v302, %v301
    %v315 = vpack.c.b16 %v304, %v303
    %v316 = vpack.c.b16 %v306, %v305
    %v317 = vpack.c.b16 %v308, %v307
    %v318 = vpack.c.b16 %v310, %v309
    %327 = vmatprep.subr.bf16.mxu0 0
    %328 = vmatpush1.bf16.msra.mxu0 %v311
    %329 = vmatprep.subr.bf16.mxu0 0
    %330 = vmatpush1.bf16.msra.mxu0 %v312
    %331 = vmatprep.subr.bf16.mxu0 0
    %332 = vmatpush1.bf16.msra.mxu0 %v313
    %333 = vmatprep.subr.bf16.mxu0 0
    %334 = vmatpush1.bf16.msra.mxu0 %v314
    %335 = vmatprep.subr.bf16.mxu0 0
    %336 = vmatpush1.bf16.msra.mxu0 %v315
    %337 = vmatprep.subr.bf16.mxu0 0
    %338 = vmatpush1.bf16.msra.mxu0 %v316
    %339 = vmatprep.subr.bf16.mxu0 0
    %340 = vmatpush1.bf16.msra.mxu0 %v317
    %341 = vmatprep.subr.bf16.mxu0 0
    %342 = vmatpush1.bf16.msra.mxu0 %v318
    %343 = vmatprep.subr.bf16.mxu0 0
    %344 = vmatpush1.bf16.msra.mxu0 0
    %345 = vmatprep.subr.bf16.mxu0 0
    %346 = vmatpush1.bf16.msra.mxu0 0
    %347 = vmatprep.subr.bf16.mxu0 0
    %348 = vmatpush1.bf16.msra.mxu0 0
    %349 = vmatprep.subr.bf16.mxu0 0
    %350 = vmatpush1.bf16.msra.mxu0 0
    %351 = vmatprep.subr.bf16.mxu0 0
    %352 = vmatpush1.bf16.msra.mxu0 0
    %353 = vmatprep.subr.bf16.mxu0 0
    %354 = vmatpush1.bf16.msra.mxu0 0
    %355 = vmatprep.subr.bf16.mxu0 0
    %356 = vmatpush1.bf16.msra.mxu0 0
    %357 = vmatprep.subr.bf16.mxu0 0
    %358 = vmatpush1.bf16.msra.mxu0 0
    %359 = vmatprep.mubr.bf16.mxu0 0
    %360 = vmatmul.mubr.bf16.gmra.mrb[0].mxu0 %v255
    %v361 = vpop.f32.mrb[0].mxu0
    %v362 = vadd.f32 %v277, %v361
    %v363 = vpop.f32.mrb[0].mxu0
    %v364 = vpop.f32.mrb[0].mxu0
    %v365 = vpop.f32.mrb[0].mxu0
    %366 = vdwg.mxu0
    %vm367 = vcmask 58368
    %368 = vst.msk [vmem:[#allocation10] sm:$0x3] %vm367, %v362
    // Predicated region
    $region46: #{tpu_custom_call.1} parent=1 // pred_check
      _
    $region47: #{tpu_custom_call.1} parent=1 // pred_check_branch
      %370 = sbr.rel (0) target = $region49
    $region48: #{tpu_custom_call.1} parent=1 // pred_region
      %s372 = ssub.s32 32, 32
      %373 = vsyncadd [#allocation4], %s372
      %s375 = sshll.u32 [#allocation10], 4
      %s376 = int_to_ptr.vmem [resolvable:$true] %s375
      %378 = dma.vmem_to_hbm [thread:$0]  %s376, 32, %s7, [#allocation4]
    $region49: #{tpu_custom_call.1} parent=1 // pred_fallthru
      _
    // Predicated region
    $region50: #{tpu_custom_call.1} parent=1 // pred_check
      _
    $region51: #{tpu_custom_call.1} parent=1 // pred_check_branch
      %380 = sbr.rel (0) target = $region53
    $region52: #{tpu_custom_call.1} parent=1 // pred_region
      %381 = dma.done [#allocation4], 32
    $region53: #{tpu_custom_call.1} parent=1 // pred_fallthru
      _
    %382 = vsyncpa [#allocation3], 1
    %383 = vsyncpa [#allocation6], 1
    %384 = vsyncpa [#allocation9], 1
    %385 = vsyncpa [#allocation4], 1

</llo_original>
